<compile_context>
chip_gen: v7x
topology: tpu7x:2x2x1
jax: 0.10.0
libtpu: 0.0.40
codegen_flags: <defaults>
</compile_context>

<pallas_src>
import jax
import jax.numpy as jnp
from jax import lax
from jax.experimental import pallas as pl
from jax.experimental.pallas import tpu as pltpu


def pairwise_head_kernel(xi_ref, xj_ref, wp_ref, b_ref, o_ref):
    # xi_ref: (1, TM, H)  row tile of x          (VMEM)
    # xj_ref: (1, TN, H)  col tile of x          (VMEM)
    # wp_ref: (2, H)      product-feature weights (VMEM)
    # b_ref : (2,)        bias                    (SMEM, scalar reads)
    # o_ref : (1, 2, TM, TN) channel-major output tile
    xi = xi_ref[0]                              # (TM, H) f32
    xj = xj_ref[0]                              # (TN, H) f32
    wp = wp_ref[...]                            # (2, H)  f32

    # Both classes in a single MXU matmul: stack the per-class scaled LHS
    # along rows -> (2*TM, H), contract against xj over H (NT matmul, so no
    # in-kernel transpose of x).
    lhs = jnp.concatenate([xi * wp[0:1, :], xi * wp[1:2, :]], axis=0)  # (2TM, H)
    acc = lax.dot_general(
        lhs.astype(jnp.bfloat16), xj.astype(jnp.bfloat16),
        dimension_numbers=(((1,), (1,)), ((), ())),
        preferred_element_type=jnp.float32)     # (2*TM, TN) f32

    tm = xi.shape[0]
    # Symmetrized result == prod_term + bias (diff term cancels exactly).
    o_ref[0, 0] = acc[:tm] + b_ref[0]
    o_ref[0, 1] = acc[tm:] + b_ref[1]


def pairwise_contact_head(x, w, b):
    """x: (B, S, H) f32; w: (2, 2H); b: (2,). Returns (B, S-2, S-2, 2) f32."""
    B, S, H = x.shape
    wp = w[:, :H]   # diff-feature weights [:, H:] cancel under symmetrization

    LANE = 128
    s_pad = ((S + LANE - 1) // LANE) * LANE     # lane-dense, unmasked stores
    tile = 256 if s_pad % 256 == 0 else 128     # 256-wide tiles when possible
    if s_pad != S:
        x = jnp.pad(x, ((0, 0), (0, s_pad - S), (0, 0)))

    grid = (B, s_pad // tile, s_pad // tile)
    out = pl.pallas_call(
        pairwise_head_kernel,
        out_shape=jax.ShapeDtypeStruct((B, 2, s_pad, s_pad), jnp.float32),
        grid_spec=pltpu.PrefetchScalarGridSpec(
            num_scalar_prefetch=0,
            grid=grid,
            in_specs=[
                pl.BlockSpec((1, tile, H), lambda bi, i, j: (bi, i, 0)),
                pl.BlockSpec((1, tile, H), lambda bi, i, j: (bi, j, 0)),
                pl.BlockSpec((2, H), lambda bi, i, j: (0, 0)),
                pl.BlockSpec(memory_space=pltpu.MemorySpace.SMEM),
            ],
            out_specs=pl.BlockSpec((1, 2, tile, tile),
                                   lambda bi, i, j: (bi, 0, i, j)),
        ),
        compiler_params=pltpu.CompilerParams(
            dimension_semantics=("parallel", "parallel", "parallel")),
    )(x, x, wp, b)

    # Slice the border (torch's [:, 1:-1, 1:-1]) and any lane padding while
    # still channel-major, THEN transpose -> far fewer bytes moved by XLA.
    pred = out[:, :, 1:S - 1, 1:S - 1]          # (B, 2, S-2, S-2)
    return jnp.transpose(pred, (0, 2, 3, 1))    # (B, S-2, S-2, 2)


def reference(x, w, b):
    """Pure-JAX reference mirroring the PyTorch forward (eval-mode dropout)."""
    prod = x[:, :, None, :] * x[:, None, :, :]
    diff = x[:, :, None, :] - x[:, None, :, :]
    feat = jnp.concatenate([prod, diff], axis=-1)        # (B, S, S, 2H)
    pred = feat @ w.T + b                                # (B, S, S, 2)
    pred = (pred + jnp.swapaxes(pred, 1, 2)) / 2
    return pred[:, 1:-1, 1:-1, :]


if __name__ == "__main__":
    B, S, H = 2, 8, 32

    key = jax.random.PRNGKey(0)
    k_x, k_w, k_b = jax.random.split(key, 3)

    # deterministic synthetic parameters for Linear(2*H, 2)
    w = (jax.random.normal(k_w, (2, 2 * H), dtype=jnp.float32)
         / jnp.sqrt(jnp.float32(2 * H)))
    b = jax.random.normal(k_b, (2,), dtype=jnp.float32) * 0.01

    x = jax.random.normal(k_x, (B, S, H), dtype=jnp.float32)

    out = jax.block_until_ready(pairwise_contact_head(x, w, b))
    ref = reference(x, w, b)

    assert out.shape == (B, S - 2, S - 2, 2), out.shape
    # bf16 MXU inputs with f32 accumulation -> tolerance relaxed vs f32 ref.
    max_err = float(jnp.max(jnp.abs(out - ref)))
    assert jnp.allclose(out, ref, rtol=2e-2, atol=2e-2), max_err

    print("KERNEL_OK")
</pallas_src>

<mosaic_0001>
module attributes {stable_mosaic.version = 11 : i64} {
  func.func @pairwise_head_kernel(%arg0: i32, %arg1: i32, %arg2: i32, %arg3: memref<1x128x32xf32, #tpu.memory_space<vmem>>, %arg4: memref<1x128x32xf32, #tpu.memory_space<vmem>>, %arg5: memref<2x32xf32, #tpu.memory_space<vmem>>, %arg6: memref<2xf32, #tpu.memory_space<smem>>, %arg7: memref<1x2x128x128xf32, #tpu.memory_space<vmem>>) attributes {dimension_semantics = [#tpu.dimension_semantics<parallel>, #tpu.dimension_semantics<parallel>, #tpu.dimension_semantics<parallel>], iteration_bounds = array<i64: 2, 1, 1>, scalar_prefetch = 0 : i64, scratch_operands = 0 : i64, tpu.core_type = #tpu.core_type<tc>, window_params = [{transform_indices = @transform_0, window_bounds = array<i64: 1, 128, 32>}, {transform_indices = @transform_1, window_bounds = array<i64: 1, 128, 32>}, {pipeline_mode = #tpu.pipeline_mode<synchronous>, transform_indices = @transform_2, window_bounds = array<i64: 2, 32>}, {transform_indices = @transform_3, window_bounds = array<i64: 2>}, {transform_indices = @transform_4, window_bounds = array<i64: 1, 2, 128, 128>}]} {
    %c0 = arith.constant 0 : index
    %c0_0 = arith.constant 0 : index
    %c0_1 = arith.constant 0 : index
    %0 = vector.load %arg3[%c0, %c0_0, %c0_1] : memref<1x128x32xf32, #tpu.memory_space<vmem>>, vector<1x128x32xf32>
    %1 = vector.shape_cast %0 : vector<1x128x32xf32> to vector<128x32xf32>
    %c0_2 = arith.constant 0 : index
    %c0_3 = arith.constant 0 : index
    %c0_4 = arith.constant 0 : index
    %2 = vector.load %arg4[%c0_2, %c0_3, %c0_4] : memref<1x128x32xf32, #tpu.memory_space<vmem>>, vector<1x128x32xf32>
    %3 = vector.shape_cast %2 : vector<1x128x32xf32> to vector<128x32xf32>
    %c0_5 = arith.constant 0 : index
    %c0_6 = arith.constant 0 : index
    %4 = vector.load %arg5[%c0_5, %c0_6] : memref<2x32xf32, #tpu.memory_space<vmem>>, vector<2x32xf32>
    %5 = vector.extract_strided_slice %4 {offsets = [0, 0], sizes = [1, 32], strides = [1, 1]} : vector<2x32xf32> to vector<1x32xf32>
    %6 = vector.broadcast %5 : vector<1x32xf32> to vector<128x32xf32>
    %7 = arith.mulf %1, %6 : vector<128x32xf32>
    %8 = vector.extract_strided_slice %4 {offsets = [1, 0], sizes = [1, 32], strides = [1, 1]} : vector<2x32xf32> to vector<1x32xf32>
    %9 = vector.broadcast %8 : vector<1x32xf32> to vector<128x32xf32>
    %10 = arith.mulf %1, %9 : vector<128x32xf32>
    %11 = tpu.concatenate %7, %10 in 0 : vector<128x32xf32>, vector<128x32xf32> -> vector<256x32xf32>
    %12 = arith.truncf %11 : vector<256x32xf32> to vector<256x32xbf16>
    %13 = arith.truncf %3 : vector<128x32xf32> to vector<128x32xbf16>
    %cst = arith.constant dense<0.000000e+00> : vector<256x128xf32>
    %14 = tpu.matmul %12, %13, %cst {dimension_numbers = #tpu.dot_dimension_numbers<[1], [1], [0], [0], [0, 0, 1, 0], [], []>} : vector<256x32xbf16>, vector<128x32xbf16>, vector<256x128xf32> -> vector<256x128xf32>
    %15 = vector.extract_strided_slice %14 {offsets = [0, 0], sizes = [128, 128], strides = [1, 1]} : vector<256x128xf32> to vector<128x128xf32>
    %c0_7 = arith.constant 0 : index
    %16 = memref.load %arg6[%c0_7] : memref<2xf32, #tpu.memory_space<smem>>
    %17 = vector.broadcast %16 : f32 to vector<128x128xf32>
    %18 = arith.addf %15, %17 : vector<128x128xf32>
    %c0_8 = arith.constant 0 : index
    %c0_9 = arith.constant 0 : index
    %c0_10 = arith.constant 0 : index
    %c0_11 = arith.constant 0 : index
    %19 = vector.load %arg7[%c0_8, %c0_9, %c0_10, %c0_11] : memref<1x2x128x128xf32, #tpu.memory_space<vmem>>, vector<1x1x128x128xf32>
    %20 = vector.shape_cast %19 : vector<1x1x128x128xf32> to vector<128x128xf32>
    %21 = vector.shape_cast %18 : vector<128x128xf32> to vector<1x1x128x128xf32>
    tpu.vector_store %arg7[%c0_8, %c0_9, %c0_10, %c0_11], %21 {strides = array<i32>} : memref<1x2x128x128xf32, #tpu.memory_space<vmem>>, vector<1x1x128x128xf32>,
    %22 = vector.extract_strided_slice %14 {offsets = [128, 0], sizes = [128, 128], strides = [1, 1]} : vector<256x128xf32> to vector<128x128xf32>
    %c1 = arith.constant 1 : index
    %23 = memref.load %arg6[%c1] : memref<2xf32, #tpu.memory_space<smem>>
    %24 = vector.broadcast %23 : f32 to vector<128x128xf32>
    %25 = arith.addf %22, %24 : vector<128x128xf32>
    %c0_12 = arith.constant 0 : index
    %c1_13 = arith.constant 1 : index
    %c0_14 = arith.constant 0 : index
    %c0_15 = arith.constant 0 : index
    %26 = vector.load %arg7[%c0_12, %c1_13, %c0_14, %c0_15] : memref<1x2x128x128xf32, #tpu.memory_space<vmem>>, vector<1x1x128x128xf32>
    %27 = vector.shape_cast %26 : vector<1x1x128x128xf32> to vector<128x128xf32>
    %28 = vector.shape_cast %25 : vector<128x128xf32> to vector<1x1x128x128xf32>
    tpu.vector_store %arg7[%c0_12, %c1_13, %c0_14, %c0_15], %28 {strides = array<i32>} : memref<1x2x128x128xf32, #tpu.memory_space<vmem>>, vector<1x1x128x128xf32>,
    return
  }
  func.func @transform_0(%arg0: i32, %arg1: i32, %arg2: i32) -> (i32, i32, i32) {
    %c0_i32 = arith.constant 0 : i32
    %c0_i32_0 = arith.constant 0 : i32
    return %arg0, %arg1, %c0_i32 : i32, i32, i32
  }
  func.func @transform_1(%arg0: i32, %arg1: i32, %arg2: i32) -> (i32, i32, i32) {
    %c0_i32 = arith.constant 0 : i32
    %c0_i32_0 = arith.constant 0 : i32
    return %arg0, %arg2, %c0_i32 : i32, i32, i32
  }
  func.func @transform_2(%arg0: i32, %arg1: i32, %arg2: i32) -> (i32, i32) {
    %c0_i32 = arith.constant 0 : i32
    %c0_i32_0 = arith.constant 0 : i32
    %c0_i32_1 = arith.constant 0 : i32
    return %c0_i32, %c0_i32_0 : i32, i32
  }
  func.func @transform_3(%arg0: i32, %arg1: i32, %arg2: i32) -> i32 {
    %c0_i32 = arith.constant 0 : i32
    %c0_i32_0 = arith.constant 0 : i32
    return %c0_i32 : i32
  }
  func.func @transform_4(%arg0: i32, %arg1: i32, %arg2: i32) -> (i32, i32, i32, i32) {
    %c0_i32 = arith.constant 0 : i32
    %c0_i32_0 = arith.constant 0 : i32
    return %arg0, %c0_i32, %arg1, %arg2 : i32, i32, i32, i32
  }
}

</mosaic_0001>

<llo_original>
// kernel: tpu_custom_call.1
$region0: #{tpu_custom_call.1}
  #allocation0 [shape = 'u32[]', space=smem, size = 0x4, offset = 0x4, fixed_abs, tag = 'smem constant byte address 0x4 - core index']
  #allocation1 [shape = 'u32[144,128]{1,0:T(1,128)}', space=vmem, size = 0x12000, scoped, tag = 'internal scratch']
  %s0 = inlined_call_operand.vmem [shape: f32[2,128,32], index: 0, kind: input, shape index: {}]
  %s1 = inlined_call_operand.vmem [shape: f32[2,128,32], index: 1, kind: input, shape index: {}]
  %s2 = inlined_call_operand.vmem [shape: f32[2,32], index: 2, kind: input, shape index: {}]
  %s3 = inlined_call_operand.vmem [shape: f32[2], index: 3, kind: input, shape index: {}]
  %s4 = inlined_call_operand.hbm [shape: f32[2,2,128,128], index: 4, kind: output, shape index: {}]
  %s5 = sld [smem:[#allocation0]]
  $region53: #{tpu_custom_call.1} parent=0
    _
  %s7 = ssub.s32 1, %s5
  %s8 = scalar_select 0, %s7, %s5
  $region1: #{tpu_custom_call.1} parent=0
    #allocation2 [shape = 'u8[512]{0}', space=smem, size = 0x200, scoped, tag = 'input window, operand 3, single buffered']
    #allocation3 [shape = 's32[2]{0}', space=sflag, size = 0x8, scoped, tag = 'scoped memory for tpu_custom_call.1']
    #allocation4 [shape = 's32[2]{0}', space=sflag, size = 0x8, scoped, tag = 'scoped memory for tpu_custom_call.1']
    #allocation5 [shape = 'u8[262144]{0}', space=vmem, size = 0x40000, scoped, tag = 'output window, operand 0']
    %9 = vsyncpa [#allocation4], 0
    %10 = vsyncpa [#allocation3], 0
    %s11 = scalar_lea.sflag [#allocation3], 1
    %12 = vsyncpa %s11, 0
    loop: start=0, step=1, limit=4
    $region2: #{tpu_custom_call.1} parent=1 // loop_pre_header
      _
    $region3: #{tpu_custom_call.1} parent=1 // loop_header
      %s14 = sphi 0, %s18
      %p15 = scmp.ge.s32.totalorder %s14, 4
      %s21 = sphi 0, %s40
      %s22 = sphi 0, %s36
      %s23 = sphi 0, %s32
      %s24 = sphi 0, %s21
      %s25 = sphi 0, %s22
      %s26 = sphi 0, %s23
      %s27 = sphi 0, %s24
      %s28 = sphi 0, %s25
      %s29 = sphi 0, %s26
      %s45 = sphi 0, %s47
      %s48 = sphi 0, %s45
      %s49 = sphi 0, %s48
      %s65 = sphi 0, %s49
      %s73 = sphi 0, %s75
      %s76 = sphi 0, %s73
      %s77 = sphi 0, %s76
      %s93 = sphi 0, %s77
      %s97 = sphi 0, %s97
      %s99 = sphi 0, %s97
      %s100 = sphi 0, %s99
      %s114 = sphi 0, %s100
      %s118 = sphi 0, %s118
      %s120 = sphi 0, %s118
      %s121 = sphi 0, %s120
      %s135 = sphi 0, %s121
      %s145 = sphi 0, %s147
      %s148 = sphi 0, %s145
      %s149 = sphi 0, %s148
      %s165 = sphi 0, %s149
    $region4: #{tpu_custom_call.1} parent=1 // loop_header_branch
      %17 = sbr.rel (%p15) target = $region8
    $region5: #{tpu_custom_call.1} parent=1 // loop_body
      %s19 = ssub.s32 %s14, 1
      %s20 = ssub.s32 %s14, 2
      %s30 = sadd.s32 1, %s23
      %p31 = scmp.ge.s32.totalorder %s30, 1
      %s32 = scalar_select %p31, 0, %s30
      %s33 = sadd.s32 1, %s22
      %s34 = scalar_select %p31, %s33, %s22
      %p35 = scmp.ge.s32.totalorder %s34, 1
      %s36 = scalar_select %p35, 0, %s34
      %s37 = sadd.s32 1, %s21
      %s38 = scalar_select %p35, %s37, %s21
      %p39 = scmp.ge.s32.totalorder %s38, 2
      %s40 = scalar_select %p39, 0, %s38
      %s41 = ssub.s32 %s21, %s40
      %s42 = ssub.s32 %s22, %s36
      %s43 = sor.u32 %s41, %s42
      %p44 = scmp.eq.s32.totalorder %s43, 0
      %s46 = sadd.s32 %s45, 1
      %s47 = scalar_select %p44, %s45, %s46
      %p50 = pneg %p44
      %p51 = scmp.eq.s32.totalorder %s14, 1
      %p52 = por %p50, %p51
      %p53 = scmp.ne.s32.totalorder %s45, %s48
      %p54 = scmp.eq.s32.totalorder %s14, 0
      %p55 = por %p53, %p54
      %p56 = scmp.ne.s32.totalorder %s45, %s48
      %p57 = scmp.eq.s32.totalorder %s19, 1
      %p58 = por %p56, %p57
      %p59 = scmp.ne.s32.totalorder %s48, %s49
      %p60 = scmp.eq.s32.totalorder %s19, 0
      %p61 = por %p59, %p60
      %p62 = scmp.ne.s32.totalorder %s48, %s49
      %p63 = scmp.eq.s32.totalorder %s20, 1
      %p64 = por %p62, %p63
      %p66 = scmp.ne.s32.totalorder %s49, %s65
      %p67 = scmp.eq.s32.totalorder %s20, 0
      %p68 = por %p66, %p67
      %s69 = ssub.s32 %s21, %s40
      %s70 = ssub.s32 %s23, %s32
      %s71 = sor.u32 %s69, %s70
      %p72 = scmp.eq.s32.totalorder %s71, 0
      %s74 = sadd.s32 %s73, 1
      %s75 = scalar_select %p72, %s73, %s74
      %p78 = pneg %p72
      %p79 = scmp.eq.s32.totalorder %s14, 1
      %p80 = por %p78, %p79
      %p81 = scmp.ne.s32.totalorder %s73, %s76
      %p82 = scmp.eq.s32.totalorder %s14, 0
      %p83 = por %p81, %p82
      %p84 = scmp.ne.s32.totalorder %s73, %s76
      %p85 = scmp.eq.s32.totalorder %s19, 1
      %p86 = por %p84, %p85
      %p87 = scmp.ne.s32.totalorder %s76, %s77
      %p88 = scmp.eq.s32.totalorder %s19, 0
      %p89 = por %p87, %p88
      %p90 = scmp.ne.s32.totalorder %s76, %s77
      %p91 = scmp.eq.s32.totalorder %s20, 1
      %p92 = por %p90, %p91
      %p94 = scmp.ne.s32.totalorder %s77, %s93
      %p95 = scmp.eq.s32.totalorder %s20, 0
      %p96 = por %p94, %p95
      %s98 = sadd.s32 %s97, 1
      %p101 = scmp.eq.s32.totalorder %s14, 1
      %p102 = scmp.ne.s32.totalorder %s97, %s99
      %p103 = scmp.eq.s32.totalorder %s14, 0
      %p104 = por %p102, %p103
      %p105 = scmp.ne.s32.totalorder %s97, %s99
      %p106 = scmp.eq.s32.totalorder %s19, 1
      %p107 = por %p105, %p106
      %p108 = scmp.ne.s32.totalorder %s99, %s100
      %p109 = scmp.eq.s32.totalorder %s19, 0
      %p110 = por %p108, %p109
      %p111 = scmp.ne.s32.totalorder %s99, %s100
      %p112 = scmp.eq.s32.totalorder %s20, 1
      %p113 = por %p111, %p112
      %p115 = scmp.ne.s32.totalorder %s100, %s114
      %p116 = scmp.eq.s32.totalorder %s20, 0
      %p117 = por %p115, %p116
      %s119 = sadd.s32 %s118, 1
      %p122 = scmp.eq.s32.totalorder %s14, 1
      %p123 = scmp.ne.s32.totalorder %s118, %s120
      %p124 = scmp.eq.s32.totalorder %s14, 0
      %p125 = por %p123, %p124
      %p126 = scmp.ne.s32.totalorder %s118, %s120
      %p127 = scmp.eq.s32.totalorder %s19, 1
      %p128 = por %p126, %p127
      %p129 = scmp.ne.s32.totalorder %s120, %s121
      %p130 = scmp.eq.s32.totalorder %s19, 0
      %p131 = por %p129, %p130
      %p132 = scmp.ne.s32.totalorder %s120, %s121
      %p133 = scmp.eq.s32.totalorder %s20, 1
      %p134 = por %p132, %p133
      %p136 = scmp.ne.s32.totalorder %s121, %s135
      %p137 = scmp.eq.s32.totalorder %s20, 0
      %p138 = por %p136, %p137
      %s139 = ssub.s32 %s21, %s40
      %s140 = ssub.s32 %s22, %s36
      %s141 = sor.u32 %s139, %s140
      %s142 = ssub.s32 %s23, %s32
      %s143 = sor.u32 %s141, %s142
      %p144 = scmp.eq.s32.totalorder %s143, 0
      %s146 = sadd.s32 %s145, 1
      %s147 = scalar_select %p144, %s145, %s146
      %p150 = pneg %p144
      %p151 = scmp.eq.s32.totalorder %s14, 1
      %p152 = por %p150, %p151
      %p153 = scmp.ne.s32.totalorder %s145, %s148
      %p154 = scmp.eq.s32.totalorder %s14, 0
      %p155 = por %p153, %p154
      %p156 = scmp.ne.s32.totalorder %s145, %s148
      %p157 = scmp.eq.s32.totalorder %s19, 1
      %p158 = por %p156, %p157
      %p159 = scmp.ne.s32.totalorder %s148, %s149
      %p160 = scmp.eq.s32.totalorder %s19, 0
      %p161 = por %p159, %p160
      %p162 = scmp.ne.s32.totalorder %s148, %s149
      %p163 = scmp.eq.s32.totalorder %s20, 1
      %p164 = por %p162, %p163
      %p166 = scmp.ne.s32.totalorder %s149, %s165
      %p167 = scmp.eq.s32.totalorder %s20, 0
      %p168 = por %p166, %p167
      %p169 = scmp.le.s32.totalorder 1, %s14
      %p170 = scmp.lt.s32.totalorder %s14, 3
      %p171 = pnand %p169, %p170
      %p172 = pneg %p171
      // Predicated region
      $region9: #{tpu_custom_call.1} parent=5 // pred_check
        _
      $region10: #{tpu_custom_call.1} parent=5 // pred_check_branch
        %174 = sbr.rel (%p171) target = $region12
      $region11: #{tpu_custom_call.1} parent=5 // pred_region
        %s175 = ssub.s32 %s14, 1
        // Predicated region
        $region13: #{tpu_custom_call.1} parent=11 // pred_check
          %p176 = pneg %p110
        $region14: #{tpu_custom_call.1} parent=11 // pred_check_branch
          %178 = sbr.rel (%p176) target = $region16
        $region15: #{tpu_custom_call.1} parent=11 // pred_region
          _
        $region16: #{tpu_custom_call.1} parent=11 // pred_fallthru
          _
        // Predicated region
        $region17: #{tpu_custom_call.1} parent=11 // pred_check
          %p179 = pneg %p131
        $region18: #{tpu_custom_call.1} parent=11 // pred_check_branch
          %181 = sbr.rel (%p179) target = $region20
        $region19: #{tpu_custom_call.1} parent=11 // pred_region
          %s183 = ssub.s32 16, 16
          %184 = vsyncadd [#allocation4], %s183
          %s186 = sshll.u32 %s3, 4
          %s187 = int_to_ptr.vmem [resolvable:$true] %s186
          %189 = dma.vmem_to_smem %s187, 16, [#allocation2], [#allocation4]
        $region20: #{tpu_custom_call.1} parent=11 // pred_fallthru
          _
      $region12: #{tpu_custom_call.1} parent=5 // pred_fallthru
        _
      %p190 = scmp.lt.s32.totalorder %s14, 2
      // Predicated region
      $region21: #{tpu_custom_call.1} parent=5 // pred_check
        %p191 = pneg %p190
      $region22: #{tpu_custom_call.1} parent=5 // pred_check_branch
        %193 = sbr.rel (%p191) target = $region24
      $region23: #{tpu_custom_call.1} parent=5 // pred_region
        // Predicated region
        $region25: #{tpu_custom_call.1} parent=23 // pred_check
          %p194 = pneg %p55
        $region26: #{tpu_custom_call.1} parent=23 // pred_check_branch
          %196 = sbr.rel (%p194) target = $region28
        $region27: #{tpu_custom_call.1} parent=23 // pred_region
          %s197 = smul.u32 16, %s22
          %p198 = scmp.lt.s32.totalorder %s21, 1
          %s199 = scalar_select %p198, %s21, 1
          %p200 = scmp.lt.s32.totalorder %s197, 15
          %s201 = scalar_select %p200, %s197, 15
          %s202 = smul.addr %s199, 16
          %s203 = sadd.s32 %s201, %s202
          %s204 = smul.addr %s203, 8
          %s205 = scalar_lea.vmem %s0, %s204
          %s206 = smul.u32 16, %s22
        $region28: #{tpu_custom_call.1} parent=23 // pred_fallthru
          _
        // Predicated region
        $region29: #{tpu_custom_call.1} parent=23 // pred_check
          %p207 = pneg %p83
        $region30: #{tpu_custom_call.1} parent=23 // pred_check_branch
          %209 = sbr.rel (%p207) target = $region32
        $region31: #{tpu_custom_call.1} parent=23 // pred_region
          %s210 = smul.u32 16, %s23
          %p211 = scmp.lt.s32.totalorder %s21, 1
          %s212 = scalar_select %p211, %s21, 1
          %p213 = scmp.lt.s32.totalorder %s210, 15
          %s214 = scalar_select %p213, %s210, 15
          %s215 = smul.addr %s212, 16
          %s216 = sadd.s32 %s214, %s215
          %s217 = smul.addr %s216, 8
          %s218 = scalar_lea.vmem %s1, %s217
          %s219 = smul.u32 16, %s23
        $region32: #{tpu_custom_call.1} parent=23 // pred_fallthru
          _
      $region24: #{tpu_custom_call.1} parent=5 // pred_fallthru
        _
      %p220 = scmp.le.s32.totalorder 1, %s14
      %p221 = scmp.lt.s32.totalorder %s14, 3
      %p222 = pnand %p220, %p221
      %p223 = pneg %p222
      // Predicated region
      $region33: #{tpu_custom_call.1} parent=5 // pred_check
        _
      $region34: #{tpu_custom_call.1} parent=5 // pred_check_branch
        %225 = sbr.rel (%p222) target = $region36
      $region35: #{tpu_custom_call.1} parent=5 // pred_region
        %s226 = ssub.s32 %s14, 1
        // Predicated region
        $region37: #{tpu_custom_call.1} parent=35 // pred_check
          %p227 = pneg %p131
        $region38: #{tpu_custom_call.1} parent=35 // pred_check_branch
          %229 = sbr.rel (%p227) target = $region40
        $region39: #{tpu_custom_call.1} parent=35 // pred_region
          %230 = dma.done [#allocation4], 16
        $region40: #{tpu_custom_call.1} parent=35 // pred_fallthru
          _
        %231 = sfence
        %s232 = smul.u32 16, %s25
        %p233 = scmp.lt.s32.totalorder %s24, 1
        %s234 = scalar_select %p233, %s24, 1
        %p235 = scmp.lt.s32.totalorder %s232, 15
        %s236 = scalar_select %p235, %s232, 15
        %s237 = smul.addr %s234, 16
        %s238 = sadd.s32 %s236, %s237
        %s239 = smul.addr %s238, 8
        %s240 = scalar_lea.vmem %s0, %s239
        %p241 = pneg %p61
        %p242 = pneg %p58
        %s243 = smul.u32 16, %s26
        %p244 = scmp.lt.s32.totalorder %s24, 1
        %s245 = scalar_select %p244, %s24, 1
        %p246 = scmp.lt.s32.totalorder %s243, 15
        %s247 = scalar_select %p246, %s243, 15
        %s248 = smul.addr %s245, 16
        %s249 = sadd.s32 %s247, %s248
        %s250 = smul.addr %s249, 8
        %s251 = scalar_lea.vmem %s1, %s250
        %p252 = pneg %p89
        %p253 = pneg %p86
        %p254 = pneg %p110
        %p255 = pneg %p107
        %p256 = pneg %p131
        %p257 = pneg %p128
        %p258 = pneg %p161
        %p259 = pneg %p158
        %s260 = sand.u32 %s148, 1
        %s261 = scalar_lea.sflag [#allocation3], %s260
        %s262 = sand.u32 %s148, 1
        %s263 = smul.addr %s262, 256
        %s264 = scalar_lea.vmem [#allocation5], %s263
        %s265 = smul.u32 16, %s25
        %p266 = scmp.lt.s32.totalorder %s24, 1
        %s267 = scalar_select %p266, %s24, 1
        %p268 = scmp.lt.s32.totalorder %s265, 15
        %s269 = scalar_select %p268, %s265, 15
        %s270 = smul.addr %s267, 16
        %s271 = sadd.s32 %s269, %s270
        %s272 = smul.addr %s271, 8
        %s273 = scalar_lea.vmem %s0, %s272
        %s274 = smul.u32 16, %s25
        %s275 = smul.u32 16, %s26
        %p276 = scmp.lt.s32.totalorder %s24, 1
        %s277 = scalar_select %p276, %s24, 1
        %p278 = scmp.lt.s32.totalorder %s275, 15
        %s279 = scalar_select %p278, %s275, 15
        %s280 = smul.addr %s277, 16
        %s281 = sadd.s32 %s279, %s280
        %s282 = smul.addr %s281, 8
        %s283 = scalar_lea.vmem %s1, %s282
        %s284 = smul.u32 16, %s26
        %s285 = smul.u32 16, %s25
        %v287 = vld [vmem:[%s273] sm:$0xff]
        %v288 = vld [vmem:[%s273 + $0x8] sm:$0xff]
        %v289 = vld [vmem:[%s273 + $0x10] sm:$0xff]
        %v290 = vld [vmem:[%s273 + $0x18] sm:$0xff]
        %v291 = vld [vmem:[%s273 + $0x20] sm:$0xff]
        %v292 = vld [vmem:[%s273 + $0x28] sm:$0xff]
        %v293 = vld [vmem:[%s273 + $0x30] sm:$0xff]
        %v294 = vld [vmem:[%s273 + $0x38] sm:$0xff]
        %v295 = vld [vmem:[%s273 + $0x40] sm:$0xff]
        %v296 = vld [vmem:[%s273 + $0x48] sm:$0xff]
        %v297 = vld [vmem:[%s273 + $0x50] sm:$0xff]
        %v298 = vld [vmem:[%s273 + $0x58] sm:$0xff]
        %v299 = vld [vmem:[%s273 + $0x60] sm:$0xff]
        %v300 = vld [vmem:[%s273 + $0x68] sm:$0xff]
        %v301 = vld [vmem:[%s273 + $0x70] sm:$0xff]
        %v302 = vld [vmem:[%s273 + $0x78] sm:$0xff]
        %v303 = vld [vmem:[%s283] sm:$0xff]
        %v304 = vld [vmem:[%s283 + $0x8] sm:$0xff]
        %v305 = vld [vmem:[%s283 + $0x10] sm:$0xff]
        %v306 = vld [vmem:[%s283 + $0x18] sm:$0xff]
        %v307 = vld [vmem:[%s283 + $0x20] sm:$0xff]
        %v308 = vld [vmem:[%s283 + $0x28] sm:$0xff]
        %v309 = vld [vmem:[%s283 + $0x30] sm:$0xff]
        %v310 = vld [vmem:[%s283 + $0x38] sm:$0xff]
        %v311 = vld [vmem:[%s283 + $0x40] sm:$0xff]
        %v312 = vld [vmem:[%s283 + $0x48] sm:$0xff]
        %v313 = vld [vmem:[%s283 + $0x50] sm:$0xff]
        %v314 = vld [vmem:[%s283 + $0x58] sm:$0xff]
        %v315 = vld [vmem:[%s283 + $0x60] sm:$0xff]
        %v316 = vld [vmem:[%s283 + $0x68] sm:$0xff]
        %v317 = vld [vmem:[%s283 + $0x70] sm:$0xff]
        %v318 = vld [vmem:[%s283 + $0x78] sm:$0xff]
        %v319 = vld [vmem:[%s2] sm:$0x3]
        %v320 = vlaneseq
        %v321 = vshrl.u32 %v320, 7
        %v322 = vsub.s32 0, %v321
        %v323 = vrot.slane %v319, %v322
        %v324 = vmul.f32 %v287, %v323
        %v325 = vmul.f32 %v288, %v323
        %v326 = vmul.f32 %v289, %v323
        %v327 = vmul.f32 %v290, %v323
        %v328 = vmul.f32 %v291, %v323
        %v329 = vmul.f32 %v292, %v323
        %v330 = vmul.f32 %v293, %v323
        %v331 = vmul.f32 %v294, %v323
        %v332 = vmul.f32 %v295, %v323
        %v333 = vmul.f32 %v296, %v323
        %v334 = vmul.f32 %v297, %v323
        %v335 = vmul.f32 %v298, %v323
        %v336 = vmul.f32 %v299, %v323
        %v337 = vmul.f32 %v300, %v323
        %v338 = vmul.f32 %v301, %v323
        %v339 = vmul.f32 %v302, %v323
        %v340 = vlaneseq
        %v341 = vshrl.u32 %v340, 7
        %v342 = vsub.s32 1, %v341
        %v343 = vrot.slane %v319, %v342
        %v344 = vmul.f32 %v287, %v343
        %v345 = vmul.f32 %v288, %v343
        %v346 = vmul.f32 %v289, %v343
        %v347 = vmul.f32 %v290, %v343
        %v348 = vmul.f32 %v291, %v343
        %v349 = vmul.f32 %v292, %v343
        %v350 = vmul.f32 %v293, %v343
        %v351 = vmul.f32 %v294, %v343
        %v352 = vmul.f32 %v295, %v343
        %v353 = vmul.f32 %v296, %v343
        %v354 = vmul.f32 %v297, %v343
        %v355 = vmul.f32 %v298, %v343
        %v356 = vmul.f32 %v299, %v343
        %v357 = vmul.f32 %v300, %v343
        %v358 = vmul.f32 %v301, %v343
        %v359 = vmul.f32 %v302, %v343
        %v360 = vpack.c.bf16 %v325, %v324
        %v361 = vpack.c.bf16 %v327, %v326
        %v362 = vpack.c.bf16 %v329, %v328
        %v363 = vpack.c.bf16 %v331, %v330
        %v364 = vpack.c.bf16 %v333, %v332
        %v365 = vpack.c.bf16 %v335, %v334
        %v366 = vpack.c.bf16 %v337, %v336
        %v367 = vpack.c.bf16 %v339, %v338
        %v368 = vpack.c.bf16 %v345, %v344
        %v369 = vpack.c.bf16 %v347, %v346
        %v370 = vpack.c.bf16 %v349, %v348
        %v371 = vpack.c.bf16 %v351, %v350
        %v372 = vpack.c.bf16 %v353, %v352
        %v373 = vpack.c.bf16 %v355, %v354
        %v374 = vpack.c.bf16 %v357, %v356
        %v375 = vpack.c.bf16 %v359, %v358
        %v376 = vpack.c.bf16 %v304, %v303
        %v377 = vpack.c.bf16 %v306, %v305
        %v378 = vpack.c.bf16 %v308, %v307
        %v379 = vpack.c.bf16 %v310, %v309
        %v380 = vpack.c.bf16 %v312, %v311
        %v381 = vpack.c.bf16 %v314, %v313
        %v382 = vpack.c.bf16 %v316, %v315
        %v383 = vpack.c.bf16 %v318, %v317
        %vm384 = vcmask 261120
        %v386 = vsel %vm384, %v360, 0
        %v389 = vsel %vm384, %v361, 0
        %v392 = vsel %vm384, %v362, 0
        %v395 = vsel %vm384, %v363, 0
        %v398 = vsel %vm384, %v364, 0
        %v401 = vsel %vm384, %v365, 0
        %v404 = vsel %vm384, %v366, 0
        %v407 = vsel %vm384, %v367, 0
        %v410 = vsel %vm384, %v368, 0
        %v413 = vsel %vm384, %v369, 0
        %v416 = vsel %vm384, %v370, 0
        %v419 = vsel %vm384, %v371, 0
        %v422 = vsel %vm384, %v372, 0
        %v425 = vsel %vm384, %v373, 0
        %v428 = vsel %vm384, %v374, 0
        %v431 = vsel %vm384, %v375, 0
        %v434 = vsel %vm384, %v376, 0
        %v437 = vsel %vm384, %v377, 0
        %v440 = vsel %vm384, %v378, 0
        %v443 = vsel %vm384, %v379, 0
        %v446 = vsel %vm384, %v380, 0
        %v449 = vsel %vm384, %v381, 0
        %v452 = vsel %vm384, %v382, 0
        %v455 = vsel %vm384, %v383, 0
        %457 = vmatprep.subr.bf16.mxu0 0
        %458 = vmatpush1.bf16.xpose.msra.mxu0 %v434
        %459 = vmatprep.subr.bf16.mxu0 0
        %460 = vmatpush1.bf16.xpose.msra.mxu0 %v437
        %461 = vmatprep.subr.bf16.mxu0 0
        %462 = vmatpush1.bf16.xpose.msra.mxu0 %v440
        %463 = vmatprep.subr.bf16.mxu0 0
        %464 = vmatpush1.bf16.xpose.msra.mxu0 %v443
        %465 = vmatprep.subr.bf16.mxu0 0
        %466 = vmatpush1.bf16.xpose.msra.mxu0 %v446
        %467 = vmatprep.subr.bf16.mxu0 0
        %468 = vmatpush1.bf16.xpose.msra.mxu0 %v449
        %469 = vmatprep.subr.bf16.mxu0 0
        %470 = vmatpush1.bf16.xpose.msra.mxu0 %v452
        %471 = vmatprep.subr.bf16.mxu0 0
        %472 = vmatpush1.bf16.xpose.msra.mxu0 %v455
        %473 = vmatprep.subr.bf16.mxu0 0
        %474 = vmatpush1.bf16.xpose.msra.mxu0 0
        %475 = vmatprep.subr.bf16.mxu0 0
        %476 = vmatpush1.bf16.xpose.msra.mxu0 0
        %477 = vmatprep.subr.bf16.mxu0 0
        %478 = vmatpush1.bf16.xpose.msra.mxu0 0
        %479 = vmatprep.subr.bf16.mxu0 0
        %480 = vmatpush1.bf16.xpose.msra.mxu0 0
        %481 = vmatprep.subr.bf16.mxu0 0
        %482 = vmatpush1.bf16.xpose.msra.mxu0 0
        %483 = vmatprep.subr.bf16.mxu0 0
        %484 = vmatpush1.bf16.xpose.msra.mxu0 0
        %485 = vmatprep.subr.bf16.mxu0 0
        %486 = vmatpush1.bf16.xpose.msra.mxu0 0
        %487 = vmatprep.subr.bf16.mxu0 0
        %488 = vmatpush1.bf16.xpose.msra.mxu0 0
        %489 = vmatprep.mubr.bf16.mxu0 0
        %490 = vmatmul.mubr.bf16.gmra.mrb[0].mxu0 %v386
        %v491 = vpop.f32.mrb[0].mxu0
        %v492 = vadd.f32 0.0, %v491
        %v493 = vpop.f32.mrb[0].mxu0
        %v494 = vpop.f32.mrb[0].mxu0
        %v495 = vadd.f32 0.0, %v494
        %v496 = vpop.f32.mrb[0].mxu0
        %497 = vmatprep.mubr.bf16.mxu0 0
        %498 = vmatmul.mubr.bf16.gmra.mrb[0].mxu0 %v389
        %v499 = vpop.f32.mrb[0].mxu0
        %v500 = vadd.f32 0.0, %v499
        %v501 = vpop.f32.mrb[0].mxu0
        %v502 = vpop.f32.mrb[0].mxu0
        %v503 = vadd.f32 0.0, %v502
        %v504 = vpop.f32.mrb[0].mxu0
        %505 = vmatprep.mubr.bf16.mxu0 0
        %506 = vmatmul.mubr.bf16.gmra.mrb[0].mxu0 %v392
        %v507 = vpop.f32.mrb[0].mxu0
        %v508 = vadd.f32 0.0, %v507
        %v509 = vpop.f32.mrb[0].mxu0
        %v510 = vpop.f32.mrb[0].mxu0
        %v511 = vadd.f32 0.0, %v510
        %v512 = vpop.f32.mrb[0].mxu0
        %513 = vmatprep.mubr.bf16.mxu0 0
        %514 = vmatmul.mubr.bf16.gmra.mrb[0].mxu0 %v395
        %v515 = vpop.f32.mrb[0].mxu0
        %v516 = vadd.f32 0.0, %v515
        %v517 = vpop.f32.mrb[0].mxu0
        %v518 = vpop.f32.mrb[0].mxu0
        %v519 = vadd.f32 0.0, %v518
        %v520 = vpop.f32.mrb[0].mxu0
        %521 = vmatprep.mubr.bf16.mxu0 0
        %522 = vmatmul.mubr.bf16.gmra.mrb[0].mxu0 %v398
        %v523 = vpop.f32.mrb[0].mxu0
        %v524 = vadd.f32 0.0, %v523
        %v525 = vpop.f32.mrb[0].mxu0
        %v526 = vpop.f32.mrb[0].mxu0
        %v527 = vadd.f32 0.0, %v526
        %v528 = vpop.f32.mrb[0].mxu0
        %529 = vmatprep.mubr.bf16.mxu0 0
        %530 = vmatmul.mubr.bf16.gmra.mrb[0].mxu0 %v401
        %v531 = vpop.f32.mrb[0].mxu0
        %v532 = vadd.f32 0.0, %v531
        %v533 = vpop.f32.mrb[0].mxu0
        %v534 = vpop.f32.mrb[0].mxu0
        %v535 = vadd.f32 0.0, %v534
        %v536 = vpop.f32.mrb[0].mxu0
        %537 = vmatprep.mubr.bf16.mxu0 0
        %538 = vmatmul.mubr.bf16.gmra.mrb[0].mxu0 %v404
        %v539 = vpop.f32.mrb[0].mxu0
        %v540 = vadd.f32 0.0, %v539
        %v541 = vpop.f32.mrb[0].mxu0
        %v542 = vpop.f32.mrb[0].mxu0
        %v543 = vadd.f32 0.0, %v542
        %v544 = vpop.f32.mrb[0].mxu0
        %545 = vmatprep.mubr.bf16.mxu0 0
        %546 = vmatmul.mubr.bf16.gmra.mrb[0].mxu0 %v407
        %v547 = vpop.f32.mrb[0].mxu0
        %v548 = vadd.f32 0.0, %v547
        %v549 = vpop.f32.mrb[0].mxu0
        %v550 = vpop.f32.mrb[0].mxu0
        %v551 = vadd.f32 0.0, %v550
        %v552 = vpop.f32.mrb[0].mxu0
        %553 = vmatprep.mubr.bf16.mxu0 0
        %554 = vmatmul.mubr.bf16.gmra.mrb[0].mxu0 %v410
        %v555 = vpop.f32.mrb[0].mxu0
        %v556 = vadd.f32 0.0, %v555
        %v557 = vpop.f32.mrb[0].mxu0
        %v558 = vpop.f32.mrb[0].mxu0
        %v559 = vadd.f32 0.0, %v558
        %v560 = vpop.f32.mrb[0].mxu0
        %561 = vmatprep.mubr.bf16.mxu0 0
        %562 = vmatmul.mubr.bf16.gmra.mrb[0].mxu0 %v413
        %v563 = vpop.f32.mrb[0].mxu0
        %v564 = vadd.f32 0.0, %v563
        %v565 = vpop.f32.mrb[0].mxu0
        %v566 = vpop.f32.mrb[0].mxu0
        %v567 = vadd.f32 0.0, %v566
        %v568 = vpop.f32.mrb[0].mxu0
        %569 = vmatprep.mubr.bf16.mxu0 0
        %570 = vmatmul.mubr.bf16.gmra.mrb[0].mxu0 %v416
        %v571 = vpop.f32.mrb[0].mxu0
        %v572 = vadd.f32 0.0, %v571
        %v573 = vpop.f32.mrb[0].mxu0
        %v574 = vpop.f32.mrb[0].mxu0
        %v575 = vadd.f32 0.0, %v574
        %v576 = vpop.f32.mrb[0].mxu0
        %577 = vmatprep.mubr.bf16.mxu0 0
        %578 = vmatmul.mubr.bf16.gmra.mrb[0].mxu0 %v419
        %v579 = vpop.f32.mrb[0].mxu0
        %v580 = vadd.f32 0.0, %v579
        %v581 = vpop.f32.mrb[0].mxu0
        %v582 = vpop.f32.mrb[0].mxu0
        %v583 = vadd.f32 0.0, %v582
        %v584 = vpop.f32.mrb[0].mxu0
        %585 = vmatprep.mubr.bf16.mxu0 0
        %586 = vmatmul.mubr.bf16.gmra.mrb[0].mxu0 %v422
        %v587 = vpop.f32.mrb[0].mxu0
        %v588 = vadd.f32 0.0, %v587
        %v589 = vpop.f32.mrb[0].mxu0
        %v590 = vpop.f32.mrb[0].mxu0
        %v591 = vadd.f32 0.0, %v590
        %v592 = vpop.f32.mrb[0].mxu0
        %593 = vmatprep.mubr.bf16.mxu0 0
        %594 = vmatmul.mubr.bf16.gmra.mrb[0].mxu0 %v425
        %v595 = vpop.f32.mrb[0].mxu0
        %v596 = vadd.f32 0.0, %v595
        %v597 = vpop.f32.mrb[0].mxu0
        %v598 = vpop.f32.mrb[0].mxu0
        %v599 = vadd.f32 0.0, %v598
        %v600 = vpop.f32.mrb[0].mxu0
        %601 = vmatprep.mubr.bf16.mxu0 0
        %602 = vmatmul.mubr.bf16.gmra.mrb[0].mxu0 %v428
        %v603 = vpop.f32.mrb[0].mxu0
        %v604 = vadd.f32 0.0, %v603
        %v605 = vpop.f32.mrb[0].mxu0
        %v606 = vpop.f32.mrb[0].mxu0
        %v607 = vadd.f32 0.0, %v606
        %v608 = vpop.f32.mrb[0].mxu0
        %609 = vmatprep.mubr.bf16.mxu0 0
        %610 = vmatmul.mubr.bf16.gmra.mrb[0].mxu0 %v431
        %v611 = vpop.f32.mrb[0].mxu0
        %v612 = vadd.f32 0.0, %v611
        %v613 = vpop.f32.mrb[0].mxu0
        %v614 = vpop.f32.mrb[0].mxu0
        %v615 = vadd.f32 0.0, %v614
        %v616 = vpop.f32.mrb[0].mxu0
        %617 = vdwg.mxu0
        %s618 = sld [smem:[#allocation2]]
        %v619 = vstv %s618
        %v620 = vadd.f32 %v492, %v619
        %v621 = vadd.f32 %v495, %v619
        %v622 = vadd.f32 %v500, %v619
        %v623 = vadd.f32 %v503, %v619
        %v624 = vadd.f32 %v508, %v619
        %v625 = vadd.f32 %v511, %v619
        %v626 = vadd.f32 %v516, %v619
        %v627 = vadd.f32 %v519, %v619
        %v628 = vadd.f32 %v524, %v619
        %v629 = vadd.f32 %v527, %v619
        %v630 = vadd.f32 %v532, %v619
        %v631 = vadd.f32 %v535, %v619
        %v632 = vadd.f32 %v540, %v619
        %v633 = vadd.f32 %v543, %v619
        %v634 = vadd.f32 %v548, %v619
        %v635 = vadd.f32 %v551, %v619
        %636 = vst [vmem:[%s264] sm:$0xff] %v620
        %637 = vst [vmem:[%s264 + $0x8] sm:$0xff] %v621
        %638 = vst [vmem:[%s264 + $0x10] sm:$0xff] %v622
        %639 = vst [vmem:[%s264 + $0x18] sm:$0xff] %v623
        %640 = vst [vmem:[%s264 + $0x20] sm:$0xff] %v624
        %641 = vst [vmem:[%s264 + $0x28] sm:$0xff] %v625
        %642 = vst [vmem:[%s264 + $0x30] sm:$0xff] %v626
        %643 = vst [vmem:[%s264 + $0x38] sm:$0xff] %v627
        %644 = vst [vmem:[%s264 + $0x40] sm:$0xff] %v628
        %645 = vst [vmem:[%s264 + $0x48] sm:$0xff] %v629
        %646 = vst [vmem:[%s264 + $0x50] sm:$0xff] %v630
        %647 = vst [vmem:[%s264 + $0x58] sm:$0xff] %v631
        %648 = vst [vmem:[%s264 + $0x60] sm:$0xff] %v632
        %649 = vst [vmem:[%s264 + $0x68] sm:$0xff] %v633
        %650 = vst [vmem:[%s264 + $0x70] sm:$0xff] %v634
        %651 = vst [vmem:[%s264 + $0x78] sm:$0xff] %v635
        %s652 = sld [smem:[#allocation2 + $0x1]]
        %v653 = vstv %s652
        %v654 = vadd.f32 %v556, %v653
        %v655 = vadd.f32 %v559, %v653
        %v656 = vadd.f32 %v564, %v653
        %v657 = vadd.f32 %v567, %v653
        %v658 = vadd.f32 %v572, %v653
        %v659 = vadd.f32 %v575, %v653
        %v660 = vadd.f32 %v580, %v653
        %v661 = vadd.f32 %v583, %v653
        %v662 = vadd.f32 %v588, %v653
        %v663 = vadd.f32 %v591, %v653
        %v664 = vadd.f32 %v596, %v653
        %v665 = vadd.f32 %v599, %v653
        %v666 = vadd.f32 %v604, %v653
        %v667 = vadd.f32 %v607, %v653
        %v668 = vadd.f32 %v612, %v653
        %v669 = vadd.f32 %v615, %v653
        %s670 = scalar_lea.vmem %s264, 128 [#allocation5]
        %671 = vst [vmem:[%s670] sm:$0xff] %v654
        %672 = vst [vmem:[%s670 + $0x8] sm:$0xff] %v655
        %673 = vst [vmem:[%s670 + $0x10] sm:$0xff] %v656
        %674 = vst [vmem:[%s670 + $0x18] sm:$0xff] %v657
        %675 = vst [vmem:[%s670 + $0x20] sm:$0xff] %v658
        %676 = vst [vmem:[%s670 + $0x28] sm:$0xff] %v659
        %677 = vst [vmem:[%s670 + $0x30] sm:$0xff] %v660
        %678 = vst [vmem:[%s670 + $0x38] sm:$0xff] %v661
        %679 = vst [vmem:[%s670 + $0x40] sm:$0xff] %v662
        %680 = vst [vmem:[%s670 + $0x48] sm:$0xff] %v663
        %681 = vst [vmem:[%s670 + $0x50] sm:$0xff] %v664
        %682 = vst [vmem:[%s670 + $0x58] sm:$0xff] %v665
        %683 = vst [vmem:[%s670 + $0x60] sm:$0xff] %v666
        %684 = vst [vmem:[%s670 + $0x68] sm:$0xff] %v667
        %685 = vst [vmem:[%s670 + $0x70] sm:$0xff] %v668
        %686 = vst [vmem:[%s670 + $0x78] sm:$0xff] %v669
        %s687 = sand.u32 %s148, 1
        %s688 = scalar_lea.sflag [#allocation3], %s687
        %s689 = sand.u32 %s148, 1
        %s690 = smul.addr %s689, 256
        %s691 = scalar_lea.vmem [#allocation5], %s690
        // Predicated region
        $region41: #{tpu_custom_call.1} parent=35 // pred_check
          %p692 = pneg %p158
        $region42: #{tpu_custom_call.1} parent=35 // pred_check_branch
          %694 = sbr.rel (%p692) target = $region44
        $region43: #{tpu_custom_call.1} parent=35 // pred_region
          %s695 = smul.u32 16, %s25
          %s697 = ssub.s32 4096, 4096
          %698 = vsyncadd %s688, %s697
          %s699 = sadd.s32 %s26, %s695
          %s700 = smul.addr %s24, 32
          %s701 = sadd.s32 %s699, %s700
          %s702 = smul.addr %s701, 128
          %s703 = scalar_lea.hbm %s4, %s702
          %s704 = sshll.u32 %s691, 4
          %s705 = int_to_ptr.vmem [resolvable:$true] %s704
          %710 = dma.vmem_to_hbm [thread:$0]  %s705, 4096, %s703, %s688, 128, 128, 8
        $region44: #{tpu_custom_call.1} parent=35 // pred_fallthru
          _
      $region36: #{tpu_custom_call.1} parent=5 // pred_fallthru
        _
      %p711 = scmp.le.s32.totalorder 2, %s14
      // Predicated region
      $region45: #{tpu_custom_call.1} parent=5 // pred_check
        %p712 = pneg %p711
      $region46: #{tpu_custom_call.1} parent=5 // pred_check_branch
        %714 = sbr.rel (%p712) target = $region48
      $region47: #{tpu_custom_call.1} parent=5 // pred_region
        %s715 = ssub.s32 %s14, 2
        // Predicated region
        $region49: #{tpu_custom_call.1} parent=47 // pred_check
          %p716 = pneg %p164
        $region50: #{tpu_custom_call.1} parent=47 // pred_check_branch
          %718 = sbr.rel (%p716) target = $region52
        $region51: #{tpu_custom_call.1} parent=47 // pred_region
          %s719 = sand.u32 %s149, 1
          %s720 = scalar_lea.sflag [#allocation3], %s719
          %s721 = sand.u32 %s149, 1
          %s722 = smul.addr %s721, 256
          %s723 = scalar_lea.vmem [#allocation5], %s722
          %724 = dma.done %s720, 4096
        $region52: #{tpu_custom_call.1} parent=47 // pred_fallthru
          _
      $region48: #{tpu_custom_call.1} parent=5 // pred_fallthru
        _
    $region6: #{tpu_custom_call.1} parent=1 // loop_footer
      %s18 = sadd.s32 1, %s14
    $region7: #{tpu_custom_call.1} parent=1 // loop_footer_branch
      %13 = sbr.rel target = $region3
    $region8: #{tpu_custom_call.1} parent=1 // loop_exit
      _
    %725 = vsyncpa [#allocation3], 1
    %s726 = scalar_lea.sflag [#allocation3], 1
    %727 = vsyncpa %s726, 1
    %728 = vsyncpa [#allocation4], 1
    %s729 = scalar_lea.sflag [#allocation4], 1
    %730 = vsyncpa %s729, 1

</llo_original>
